<compile_context>
chip_gen: v5e
topology: v5e:2x2
jax: 0.10.0
libtpu: 0.0.40
codegen_flags: <defaults>
</compile_context>

<pallas_src>
import functools

import jax
import jax.numpy as jnp
from jax.experimental import pallas as pl
from jax.experimental.pallas import tpu as pltpu

LANE = 128  # TPU lane width; also the MXU tile width.


def mlp_kernel(x_ref, w1_ref, b1_ref, w2_ref, b2_ref, o_ref):
    # Cast the f32 activation tile to bf16 on the VPU (free vs. a separate
    # HBM cast pass), matmul on the MXU with f32 accumulation.
    x = x_ref[...].astype(jnp.bfloat16)
    h = jnp.dot(x, w1_ref[...], preferred_element_type=jnp.float32)
    # Bias + ReLU in f32 (broadcast (1, H_p) over batch rows).
    h = jnp.maximum(h + b1_ref[...], 0.0)
    # fc2: bf16 MXU inputs, f32 accumulation, bias add in f32.
    y = jnp.dot(h.astype(jnp.bfloat16), w2_ref[...],
                preferred_element_type=jnp.float32)
    o_ref[...] = (y + b2_ref[...]).astype(o_ref.dtype)


def _round_up(n, m):
    return ((n + m - 1) // m) * m


def _pad_to(a, shape):
    return jnp.pad(a, [(0, t - s) for s, t in zip(a.shape, shape)])


def pack_params(w1, b1, w2, b2):
    """Pad weights/biases to 128-lane multiples and cast matmul operands to
    bf16. Done ONCE per set of parameters (not per forward call)."""
    In, H = w1.shape
    Out = w2.shape[1]
    In_p, H_p, Out_p = (_round_up(d, LANE) for d in (In, H, Out))
    w1_p = _pad_to(w1, (In_p, H_p)).astype(jnp.bfloat16)
    w2_p = _pad_to(w2, (H_p, Out_p)).astype(jnp.bfloat16)
    b1_p = _pad_to(b1.reshape(1, H), (1, H_p)).astype(jnp.float32)
    b2_p = _pad_to(b2.reshape(1, Out), (1, Out_p)).astype(jnp.float32)
    return w1_p, b1_p, w2_p, b2_p


@functools.partial(jax.jit, static_argnames=("out_features", "block_b"))
def simple_nn_forward(x, w1_p, b1_p, w2_p, b2_p, *, out_features, block_b=256):
    """x: (B, In) f32. Packed params from pack_params() (pre-padded, bf16)."""
    B, In = x.shape
    In_p, H_p = w1_p.shape
    Out_p = w2_p.shape[1]
    assert In <= In_p

    # --- batch tiling -------------------------------------------------------
    # Don't pad tiny batches up to a full 128/256-row tile.
    block_b = min(block_b, _round_up(B, 8))
    # If the real batch exceeds 128 rows but fits one tile, split into 2 tiles
    # so both TensorCores on v7x get work on the "parallel" batch axis.
    if B > 128 and B <= block_b:
        block_b = _round_up((B + 1) // 2, 8)
    B_p = _round_up(B, block_b)
    nb = B_p // block_b

    # Activation pad (fused under this jit; zero rows/cols are exact).
    x_p = _pad_to(x, (B_p, In_p)).astype(jnp.float32)

    # --- VMEM budget / cost hint --------------------------------------------
    vmem_bytes = (
        2 * block_b * In_p * 4                      # x tile, double-buffered
        + 2 * block_b * Out_p * 4                   # out tile, double-buffered
        + 2 * (In_p * H_p + H_p * Out_p) * 2        # bf16 weights (2 buffers)
        + 2 * (H_p + Out_p) * 4                     # f32 biases (2 buffers)
        + block_b * H_p * (4 + 2)                   # f32 h + bf16 copy
    )
    vmem_limit = int(min(max(2 * vmem_bytes, 16 * 2**20), 64 * 2**20))

    cost = pl.CostEstimate(
        flops=2 * B_p * (In_p * H_p + H_p * Out_p),
        transcendentals=0,
        bytes_accessed=(B_p * In_p * 4 + In_p * H_p * 2 + H_p * Out_p * 2
                        + H_p * 4 + Out_p * 4 + B_p * Out_p * 4),
    )

    out_p = pl.pallas_call(
        mlp_kernel,
        out_shape=jax.ShapeDtypeStruct((B_p, Out_p), jnp.float32),
        grid=(nb,),
        in_specs=[
            # Activations stream per batch tile (pipelined by Pallas).
            pl.BlockSpec((block_b, In_p), lambda i: (i, 0)),
            # Weights / biases: constant block index -> stay VMEM-resident.
            pl.BlockSpec((In_p, H_p), lambda i: (0, 0)),
            pl.BlockSpec((1, H_p), lambda i: (0, 0)),
            pl.BlockSpec((H_p, Out_p), lambda i: (0, 0)),
            pl.BlockSpec((1, Out_p), lambda i: (0, 0)),
        ],
        # Lane-dense output block (last dim multiple of 128) -> unmasked vst.
        out_specs=pl.BlockSpec((block_b, Out_p), lambda i: (i, 0)),
        compiler_params=pltpu.CompilerParams(
            dimension_semantics=("parallel",),
            vmem_limit_bytes=vmem_limit,
        ),
        cost_estimate=cost,
    )(x_p, w1_p, b1_p, w2_p, b2_p)

    # Strip batch / lane padding (fused slice under the same jit).
    return out_p[:B, :out_features].astype(x.dtype)


if __name__ == "__main__":
    # Small shapes consistent with SimpleNN(input_size, hidden_size, output_size).
    batch, input_size, hidden_size, output_size = 8, 32, 64, 16

    key = jax.random.PRNGKey(0)
    kx, kw1, kb1, kw2, kb2 = jax.random.split(key, 5)

    x = jax.random.normal(kx, (batch, input_size), dtype=jnp.float32)
    # Deterministic synthetic params, stored pre-transposed as (in, out).
    w1 = jax.random.normal(kw1, (input_size, hidden_size), dtype=jnp.float32) * 0.1
    b1 = jax.random.normal(kb1, (hidden_size,), dtype=jnp.float32) * 0.1
    w2 = jax.random.normal(kw2, (hidden_size, output_size), dtype=jnp.float32) * 0.1
    b2 = jax.random.normal(kb2, (output_size,), dtype=jnp.float32) * 0.1

    # Pack (pad + bf16-cast) weights once, outside the per-call path.
    packed = jax.block_until_ready(pack_params(w1, b1, w2, b2))

    out = simple_nn_forward(x, *packed, out_features=output_size)
    out = jax.block_until_ready(out)

    # Pure-JAX f32 reference (kernel uses bf16 MXU inputs -> loose tolerance).
    ref = jnp.maximum(x @ w1 + b1, 0.0) @ w2 + b2
    assert out.shape == (batch, output_size)
    assert jnp.allclose(out, ref, atol=2e-2, rtol=2e-2), (
        float(jnp.max(jnp.abs(out - ref))))

    print("KERNEL_OK")
</pallas_src>

<mosaic_0001>
module attributes {stable_mosaic.version = 11 : i64} {
  func.func @mlp_kernel(%arg0: i32, %arg1: memref<8x128xf32, #tpu.memory_space<vmem>>, %arg2: memref<128x128xbf16, #tpu.memory_space<vmem>>, %arg3: memref<1x128xf32, #tpu.memory_space<vmem>>, %arg4: memref<128x128xbf16, #tpu.memory_space<vmem>>, %arg5: memref<1x128xf32, #tpu.memory_space<vmem>>, %arg6: memref<8x128xf32, #tpu.memory_space<vmem>>) attributes {dimension_semantics = [#tpu.dimension_semantics<parallel>], iteration_bounds = array<i64: 1>, scalar_prefetch = 0 : i64, scratch_operands = 0 : i64, tpu.core_type = #tpu.core_type<tc>, window_params = [{transform_indices = @transform_0, window_bounds = array<i64: 8, 128>}, {pipeline_mode = #tpu.pipeline_mode<synchronous>, transform_indices = @transform_1, window_bounds = array<i64: 128, 128>}, {pipeline_mode = #tpu.pipeline_mode<synchronous>, transform_indices = @transform_2, window_bounds = array<i64: 1, 128>}, {pipeline_mode = #tpu.pipeline_mode<synchronous>, transform_indices = @transform_3, window_bounds = array<i64: 128, 128>}, {pipeline_mode = #tpu.pipeline_mode<synchronous>, transform_indices = @transform_4, window_bounds = array<i64: 1, 128>}, {transform_indices = @transform_5, window_bounds = array<i64: 8, 128>}]} {
    %c0 = arith.constant 0 : index
    %c0_0 = arith.constant 0 : index
    %0 = vector.load %arg1[%c0, %c0_0] : memref<8x128xf32, #tpu.memory_space<vmem>>, vector<8x128xf32>
    %1 = arith.truncf %0 : vector<8x128xf32> to vector<8x128xbf16>
    %c0_1 = arith.constant 0 : index
    %c0_2 = arith.constant 0 : index
    %2 = vector.load %arg2[%c0_1, %c0_2] : memref<128x128xbf16, #tpu.memory_space<vmem>>, vector<128x128xbf16>
    %cst = arith.constant dense<0.000000e+00> : vector<8x128xf32>
    %3 = tpu.matmul %1, %2, %cst {dimension_numbers = #tpu.dot_dimension_numbers<[1], [0], [0], [1], [0, 0, 1, 1], [], []>} : vector<8x128xbf16>, vector<128x128xbf16>, vector<8x128xf32> -> vector<8x128xf32>
    %c0_3 = arith.constant 0 : index
    %c0_4 = arith.constant 0 : index
    %4 = vector.load %arg3[%c0_3, %c0_4] : memref<1x128xf32, #tpu.memory_space<vmem>>, vector<1x128xf32>
    %5 = vector.broadcast %4 : vector<1x128xf32> to vector<8x128xf32>
    %6 = arith.addf %3, %5 : vector<8x128xf32>
    %cst_5 = arith.constant 0.000000e+00 : f32
    %7 = vector.broadcast %cst_5 : f32 to vector<8x128xf32>
    %8 = arith.maximumf %6, %7 : vector<8x128xf32>
    %9 = arith.truncf %8 : vector<8x128xf32> to vector<8x128xbf16>
    %c0_6 = arith.constant 0 : index
    %c0_7 = arith.constant 0 : index
    %10 = vector.load %arg4[%c0_6, %c0_7] : memref<128x128xbf16, #tpu.memory_space<vmem>>, vector<128x128xbf16>
    %cst_8 = arith.constant dense<0.000000e+00> : vector<8x128xf32>
    %11 = tpu.matmul %9, %10, %cst_8 {dimension_numbers = #tpu.dot_dimension_numbers<[1], [0], [0], [1], [0, 0, 1, 1], [], []>} : vector<8x128xbf16>, vector<128x128xbf16>, vector<8x128xf32> -> vector<8x128xf32>
    %c0_9 = arith.constant 0 : index
    %c0_10 = arith.constant 0 : index
    %12 = vector.load %arg5[%c0_9, %c0_10] : memref<1x128xf32, #tpu.memory_space<vmem>>, vector<1x128xf32>
    %13 = vector.broadcast %12 : vector<1x128xf32> to vector<8x128xf32>
    %14 = arith.addf %11, %13 : vector<8x128xf32>
    %c0_11 = arith.constant 0 : index
    %c0_12 = arith.constant 0 : index
    %15 = vector.load %arg6[%c0_11, %c0_12] : memref<8x128xf32, #tpu.memory_space<vmem>>, vector<8x128xf32>
    tpu.vector_store %arg6[%c0_11, %c0_12], %14 {strides = array<i32>} : memref<8x128xf32, #tpu.memory_space<vmem>>, vector<8x128xf32>,
    return
  }
  func.func @transform_0(%arg0: i32) -> (i32, i32) {
    %c0_i32 = arith.constant 0 : i32
    %c0_i32_0 = arith.constant 0 : i32
    return %arg0, %c0_i32 : i32, i32
  }
  func.func @transform_1(%arg0: i32) -> (i32, i32) {
    %c0_i32 = arith.constant 0 : i32
    %c0_i32_0 = arith.constant 0 : i32
    %c0_i32_1 = arith.constant 0 : i32
    return %c0_i32, %c0_i32_0 : i32, i32
  }
  func.func @transform_2(%arg0: i32) -> (i32, i32) {
    %c0_i32 = arith.constant 0 : i32
    %c0_i32_0 = arith.constant 0 : i32
    %c0_i32_1 = arith.constant 0 : i32
    return %c0_i32, %c0_i32_0 : i32, i32
  }
  func.func @transform_3(%arg0: i32) -> (i32, i32) {
    %c0_i32 = arith.constant 0 : i32
    %c0_i32_0 = arith.constant 0 : i32
    %c0_i32_1 = arith.constant 0 : i32
    return %c0_i32, %c0_i32_0 : i32, i32
  }
  func.func @transform_4(%arg0: i32) -> (i32, i32) {
    %c0_i32 = arith.constant 0 : i32
    %c0_i32_0 = arith.constant 0 : i32
    %c0_i32_1 = arith.constant 0 : i32
    return %c0_i32, %c0_i32_0 : i32, i32
  }
  func.func @transform_5(%arg0: i32) -> (i32, i32) {
    %c0_i32 = arith.constant 0 : i32
    %c0_i32_0 = arith.constant 0 : i32
    return %arg0, %c0_i32 : i32, i32
  }
}

</mosaic_0001>

<llo_original>
// kernel: simple_nn_forward.1
$region0: #{simple_nn_forward.1}
  #allocation0 [shape = 'u32[]', space=smem, size = 0x4, offset = 0x4, fixed_abs, tag = 'smem constant byte address 0x4 - core index']
  #allocation1 [shape = 'u32[72,128]{1,0:T(1,128)}', space=vmem, size = 0x9000, scoped, tag = 'internal scratch']
  %s0 = inlined_call_operand.vmem [shape: f32[8,128], index: 0, kind: input, shape index: {}]
  %s1 = inlined_call_operand.hbm [shape: bf16[128,128], index: 1, kind: input, shape index: {}]
  %s2 = inlined_call_operand.vmem [shape: f32[1,128], index: 2, kind: input, shape index: {}]
  %s3 = inlined_call_operand.hbm [shape: bf16[128,128], index: 3, kind: input, shape index: {}]
  %s4 = inlined_call_operand.vmem [shape: f32[1,128], index: 4, kind: input, shape index: {}]
  %s5 = inlined_call_operand.hbm [shape: f32[8,128], index: 5, kind: output, shape index: {}]
  %s6 = sld [smem:[#allocation0]]
  $region38: #{simple_nn_forward.1} parent=0
    _
  %s8 = ssub.s32 1, %s6
  %s9 = scalar_select 0, %s8, %s6
  $region1: #{simple_nn_forward.1} parent=0
    #allocation2 [shape = 'u8[32768]{0}', space=vmem, size = 0x8000, scoped, tag = 'input window, operand 1, single buffered']
    #allocation3 [shape = 's32[1]{0}', space=sflag, size = 0x4, scoped, tag = 'scoped memory for simple_nn_forward.1']
    #allocation4 [shape = 's32[1]{0}', space=sflag, size = 0x4, scoped, tag = 'scoped memory for simple_nn_forward.1']
    #allocation5 [shape = 'u8[32768]{0}', space=vmem, size = 0x8000, scoped, tag = 'input window, operand 3, single buffered']
    #allocation6 [shape = 's32[1]{0}', space=sflag, size = 0x4, scoped, tag = 'scoped memory for simple_nn_forward.1']
    #allocation7 [shape = 'u8[4096]{0}', space=vmem, size = 0x1000, scoped, tag = 'output window, operand 0, single buffered']
    %10 = vsyncpa [#allocation3], 0
    %11 = vsyncpa [#allocation6], 0
    %12 = vsyncpa [#allocation4], 0
    // Predicated region
    $region2: #{simple_nn_forward.1} parent=1 // pred_check
      _
    $region3: #{simple_nn_forward.1} parent=1 // pred_check_branch
      %14 = sbr.rel (0) target = $region5
    $region4: #{simple_nn_forward.1} parent=1 // pred_region
      _
    $region5: #{simple_nn_forward.1} parent=1 // pred_fallthru
      _
    // Predicated region
    $region6: #{simple_nn_forward.1} parent=1 // pred_check
      _
    $region7: #{simple_nn_forward.1} parent=1 // pred_check_branch
      %16 = sbr.rel (0) target = $region9
    $region8: #{simple_nn_forward.1} parent=1 // pred_region
      %18 = vsyncadd [#allocation3], 0
      %s19 = sshll.u32 %s1, 4
      %s20 = int_to_ptr.hbm [resolvable:$true] %s19
      %s21 = sshll.u32 [#allocation2], 4
      %s22 = int_to_ptr.vmem [resolvable:$true] %s21
      %27 = dma.hbm_to_vmem [thread:$0]  %s20, 1024, %s22, [#allocation3], 64, 64, 4
    $region9: #{simple_nn_forward.1} parent=1 // pred_fallthru
      _
    // Predicated region
    $region10: #{simple_nn_forward.1} parent=1 // pred_check
      _
    $region11: #{simple_nn_forward.1} parent=1 // pred_check_branch
      %29 = sbr.rel (0) target = $region13
    $region12: #{simple_nn_forward.1} parent=1 // pred_region
      _
    $region13: #{simple_nn_forward.1} parent=1 // pred_fallthru
      _
    // Predicated region
    $region14: #{simple_nn_forward.1} parent=1 // pred_check
      _
    $region15: #{simple_nn_forward.1} parent=1 // pred_check_branch
      %31 = sbr.rel (0) target = $region17
    $region16: #{simple_nn_forward.1} parent=1 // pred_region
      %33 = vsyncadd [#allocation6], 0
      %s34 = sshll.u32 %s3, 4
      %s35 = int_to_ptr.hbm [resolvable:$true] %s34
      %s36 = sshll.u32 [#allocation5], 4
      %s37 = int_to_ptr.vmem [resolvable:$true] %s36
      %42 = dma.hbm_to_vmem [thread:$0]  %s35, 1024, %s37, [#allocation6], 64, 64, 4
    $region17: #{simple_nn_forward.1} parent=1 // pred_fallthru
      _
    // Predicated region
    $region18: #{simple_nn_forward.1} parent=1 // pred_check
      _
    $region19: #{simple_nn_forward.1} parent=1 // pred_check_branch
      %44 = sbr.rel (0) target = $region21
    $region20: #{simple_nn_forward.1} parent=1 // pred_region
      _
    $region21: #{simple_nn_forward.1} parent=1 // pred_fallthru
      _
    // Predicated region
    $region22: #{simple_nn_forward.1} parent=1 // pred_check
      _
    $region23: #{simple_nn_forward.1} parent=1 // pred_check_branch
      %46 = sbr.rel (0) target = $region25
    $region24: #{simple_nn_forward.1} parent=1 // pred_region
      %48 = dma.done [#allocation3], 1024
    $region25: #{simple_nn_forward.1} parent=1 // pred_fallthru
      _
    // Predicated region
    $region26: #{simple_nn_forward.1} parent=1 // pred_check
      _
    $region27: #{simple_nn_forward.1} parent=1 // pred_check_branch
      %50 = sbr.rel (0) target = $region29
    $region28: #{simple_nn_forward.1} parent=1 // pred_region
      %52 = dma.done [#allocation6], 1024
    $region29: #{simple_nn_forward.1} parent=1 // pred_fallthru
      _
    %v53 = vld [vmem:[%s0] sm:$0xff]
    %v54 = vpack.c.bf16 %v53, %v53
    %v55 = vld [vmem:[#allocation2] sm:$0xf]
    %v56 = vld [vmem:[#allocation2 + $0x4] sm:$0xf]
    %v57 = vld [vmem:[#allocation2 + $0x8] sm:$0xf]
    %v58 = vld [vmem:[#allocation2 + $0xc] sm:$0xf]
    %v59 = vld [vmem:[#allocation2 + $0x10] sm:$0xf]
    %v60 = vld [vmem:[#allocation2 + $0x14] sm:$0xf]
    %v61 = vld [vmem:[#allocation2 + $0x18] sm:$0xf]
    %v62 = vld [vmem:[#allocation2 + $0x1c] sm:$0xf]
    %v63 = vld [vmem:[#allocation2 + $0x20] sm:$0xf]
    %v64 = vld [vmem:[#allocation2 + $0x24] sm:$0xf]
    %v65 = vld [vmem:[#allocation2 + $0x28] sm:$0xf]
    %v66 = vld [vmem:[#allocation2 + $0x2c] sm:$0xf]
    %v67 = vld [vmem:[#allocation2 + $0x30] sm:$0xf]
    %v68 = vld [vmem:[#allocation2 + $0x34] sm:$0xf]
    %v69 = vld [vmem:[#allocation2 + $0x38] sm:$0xf]
    %v70 = vld [vmem:[#allocation2 + $0x3c] sm:$0xf]
    %v71 = vld [vmem:[%s2] sm:$0x1]
    %v73 = vperm.slane %v71, 0
    %v91 = vunpack.c.l.b16 %v55
    %v92 = vunpack.c.l.b16 %v56
    %v93 = vunpack.c.l.b16 %v57
    %v94 = vunpack.c.l.b16 %v58
    %v95 = vunpack.c.l.b16 %v59
    %v96 = vunpack.c.l.b16 %v60
    %v97 = vunpack.c.l.b16 %v61
    %v98 = vunpack.c.l.b16 %v62
    %v99 = vunpack.c.l.b16 %v63
    %v100 = vunpack.c.l.b16 %v64
    %v101 = vunpack.c.l.b16 %v65
    %v102 = vunpack.c.l.b16 %v66
    %v103 = vunpack.c.l.b16 %v67
    %v104 = vunpack.c.l.b16 %v68
    %v105 = vunpack.c.l.b16 %v69
    %v106 = vunpack.c.l.b16 %v70
    %v107 = vpack.c.b16 %v92, %v91
    %v108 = vpack.c.b16 %v94, %v93
    %v109 = vpack.c.b16 %v96, %v95
    %v110 = vpack.c.b16 %v98, %v97
    %v111 = vpack.c.b16 %v100, %v99
    %v112 = vpack.c.b16 %v102, %v101
    %v113 = vpack.c.b16 %v104, %v103
    %v114 = vpack.c.b16 %v106, %v105
    %123 = vmatpush.bf16.msra.mxu0 %v114
    %124 = vmatpush.bf16.msra.mxu0 %v113
    %125 = vmatpush.bf16.msra.mxu0 %v112
    %126 = vmatpush.bf16.msra.mxu0 %v111
    %127 = vmatpush.bf16.msra.mxu0 %v110
    %128 = vmatpush.bf16.msra.mxu0 %v109
    %129 = vmatpush.bf16.msra.mxu0 %v108
    %130 = vmatpush.bf16.msra.mxu0 %v107
    %131 = vmatmul.bf16.gmra.mxu0 %v54
    %v132 = vpop.f32.mrf.mxu0
    %v133 = vadd.f32 %v73, %v132
    %v134 = vpop.f32.mrf.mxu0
    %135 = vdwg.mxu0
    %v136 = vmax.f32 %v133, 0.0
    %v137 = vpack.c.bf16 %v136, %v136
    %v138 = vld [vmem:[#allocation5] sm:$0xf]
    %v139 = vld [vmem:[#allocation5 + $0x4] sm:$0xf]
    %v140 = vld [vmem:[#allocation5 + $0x8] sm:$0xf]
    %v141 = vld [vmem:[#allocation5 + $0xc] sm:$0xf]
    %v142 = vld [vmem:[#allocation5 + $0x10] sm:$0xf]
    %v143 = vld [vmem:[#allocation5 + $0x14] sm:$0xf]
    %v144 = vld [vmem:[#allocation5 + $0x18] sm:$0xf]
    %v145 = vld [vmem:[#allocation5 + $0x1c] sm:$0xf]
    %v146 = vld [vmem:[#allocation5 + $0x20] sm:$0xf]
    %v147 = vld [vmem:[#allocation5 + $0x24] sm:$0xf]
    %v148 = vld [vmem:[#allocation5 + $0x28] sm:$0xf]
    %v149 = vld [vmem:[#allocation5 + $0x2c] sm:$0xf]
    %v150 = vld [vmem:[#allocation5 + $0x30] sm:$0xf]
    %v151 = vld [vmem:[#allocation5 + $0x34] sm:$0xf]
    %v152 = vld [vmem:[#allocation5 + $0x38] sm:$0xf]
    %v153 = vld [vmem:[#allocation5 + $0x3c] sm:$0xf]
    %v154 = vld [vmem:[%s4] sm:$0x1]
    %v156 = vperm.slane %v154, 0
    %v174 = vunpack.c.l.b16 %v138
    %v175 = vunpack.c.l.b16 %v139
    %v176 = vunpack.c.l.b16 %v140
    %v177 = vunpack.c.l.b16 %v141
    %v178 = vunpack.c.l.b16 %v142
    %v179 = vunpack.c.l.b16 %v143
    %v180 = vunpack.c.l.b16 %v144
    %v181 = vunpack.c.l.b16 %v145
    %v182 = vunpack.c.l.b16 %v146
    %v183 = vunpack.c.l.b16 %v147
    %v184 = vunpack.c.l.b16 %v148
    %v185 = vunpack.c.l.b16 %v149
    %v186 = vunpack.c.l.b16 %v150
    %v187 = vunpack.c.l.b16 %v151
    %v188 = vunpack.c.l.b16 %v152
    %v189 = vunpack.c.l.b16 %v153
    %v190 = vpack.c.b16 %v175, %v174
    %v191 = vpack.c.b16 %v177, %v176
    %v192 = vpack.c.b16 %v179, %v178
    %v193 = vpack.c.b16 %v181, %v180
    %v194 = vpack.c.b16 %v183, %v182
    %v195 = vpack.c.b16 %v185, %v184
    %v196 = vpack.c.b16 %v187, %v186
    %v197 = vpack.c.b16 %v189, %v188
    %206 = vmatpush.bf16.msra.mxu0 %v197
    %207 = vmatpush.bf16.msra.mxu0 %v196
    %208 = vmatpush.bf16.msra.mxu0 %v195
    %209 = vmatpush.bf16.msra.mxu0 %v194
    %210 = vmatpush.bf16.msra.mxu0 %v193
    %211 = vmatpush.bf16.msra.mxu0 %v192
    %212 = vmatpush.bf16.msra.mxu0 %v191
    %213 = vmatpush.bf16.msra.mxu0 %v190
    %214 = vmatmul.bf16.gmra.mxu0 %v137
    %v215 = vpop.f32.mrf.mxu0
    %v216 = vadd.f32 %v156, %v215
    %v217 = vpop.f32.mrf.mxu0
    %218 = vdwg.mxu0
    %219 = vst [vmem:[#allocation7] sm:$0xff] %v216
    // Predicated region
    $region30: #{simple_nn_forward.1} parent=1 // pred_check
      _
    $region31: #{simple_nn_forward.1} parent=1 // pred_check_branch
      %221 = sbr.rel (0) target = $region33
    $region32: #{simple_nn_forward.1} parent=1 // pred_region
      %223 = vsyncadd [#allocation4], 0
      %s225 = sshll.u32 [#allocation7], 4
      %s226 = int_to_ptr.vmem [resolvable:$true] %s225
      %s227 = sshll.u32 %s5, 4
      %s228 = int_to_ptr.hbm [resolvable:$true] %s227
      %230 = dma.vmem_to_hbm [thread:$0]  %s226, 128, %s228, [#allocation4]
    $region33: #{simple_nn_forward.1} parent=1 // pred_fallthru
      _
    // Predicated region
    $region34: #{simple_nn_forward.1} parent=1 // pred_check
      _
    $region35: #{simple_nn_forward.1} parent=1 // pred_check_branch
      %232 = sbr.rel (0) target = $region37
    $region36: #{simple_nn_forward.1} parent=1 // pred_region
      %234 = dma.done [#allocation4], 128
    $region37: #{simple_nn_forward.1} parent=1 // pred_fallthru
      _
    %235 = vsyncpa [#allocation3], 1
    %236 = vsyncpa [#allocation6], 1
    %237 = vsyncpa [#allocation4], 1

</llo_original>
